<compile_context>
chip_gen: v7x
topology: tpu7x:2x2x1
jax: 0.10.0
libtpu: 0.0.40
codegen_flags: <defaults>
</compile_context>

<pallas_src>
import functools
from math import sqrt

import jax
import jax.numpy as jnp
from jax import lax
from jax.experimental import pallas as pl
from jax.experimental.pallas import tpu as pltpu


def _flash_sdpa_kernel(q_ref, k_ref, v_ref, o_ref, m_ref, l_ref, acc_ref, *,
                       scale, tkv, mxu_dtype, exp_in_bf16):
    """One (tq, D) query tile against the full (S, D) resident K/V blocks."""
    num_kv = k_ref.shape[0] // tkv

    # Per-invocation init of the online-softmax accumulators (scratch persists
    # across grid steps, so reset unconditionally at the start of each q tile).
    m_ref[...] = jnp.full_like(m_ref, -jnp.inf)
    l_ref[...] = jnp.zeros_like(l_ref)
    acc_ref[...] = jnp.zeros_like(acc_ref)

    # Read q once per q-tile (hoisted out of the KV loop).  No pre-scale here:
    # the 1/sqrt(n) scale is applied to the f32 scores below, so bf16 q is not
    # rounded before the f32-accumulating matmul.
    q = q_ref[...]
    if mxu_dtype is not None:
        q = q.astype(mxu_dtype)

    @pl.loop(0, num_kv)
    def _kv_step(i):
        start = pl.multiple_of(i * tkv, tkv)
        k_chunk = k_ref[pl.ds(start, tkv), :]
        v_chunk = v_ref[pl.ds(start, tkv), :]
        if mxu_dtype is not None:
            k_chunk = k_chunk.astype(mxu_dtype)
            v_chunk = v_chunk.astype(mxu_dtype)

        # scores = q @ k_chunk^T without materializing a transpose: contract
        # the last axes of both operands.  Accumulate in f32 on the MXU.
        s = lax.dot_general(
            q, k_chunk,
            dimension_numbers=(((1,), (1,)), ((), ())),
            preferred_element_type=jnp.float32,
        ) * scale  # (tq, tkv), f32 -- scale applied in f32, matching reference.

        m_prev = m_ref[...]
        m_new = jnp.maximum(m_prev, jnp.max(s, axis=-1, keepdims=True))
        alpha = jnp.exp(m_prev - m_new)          # rescale factor for old partials

        if exp_in_bf16:
            # Optional v6e/v7x micro-opt: EUP runs bf16 exp ~2x faster; keep the
            # row-sum accumulation in f32.  Off by default (small extra rounding).
            p = jnp.exp((s - m_new).astype(jnp.bfloat16))
            row_sum = jnp.sum(p, axis=-1, dtype=jnp.float32, keepdims=True)
        else:
            p = jnp.exp(s - m_new)               # (tq, tkv), f32
            row_sum = jnp.sum(p, axis=-1, keepdims=True)

        l_ref[...] = alpha * l_ref[...] + row_sum
        acc_ref[...] = alpha * acc_ref[...] + jnp.dot(
            p.astype(v_chunk.dtype), v_chunk, preferred_element_type=jnp.float32)
        m_ref[...] = m_new

    # Finalize: exact reciprocal (runs once per q tile, negligible cost) so the
    # exact-f32 path matches the reference tightly.
    inv_l = 1.0 / l_ref[...]
    o_ref[...] = (acc_ref[...] * inv_l).astype(o_ref.dtype)


def _pick_tile(s, preferred):
    """Largest power-of-two tile <= preferred that divides s; else full extent."""
    if s <= preferred:
        return s
    t = preferred
    while t >= 8:
        if s % t == 0:
            return t
        t //= 2
    # TODO(synk): pad/mask ragged S instead of an untiled full-extent fallback.
    return s


def scaled_dot_product_attention(q, k, v, n, *, tq=512, tkv=256,
                                 mxu_bf16=True, exp_in_bf16=False):
    """q, k, v: [B, H, S, D]; n: normalization constant. Returns [B, H, S, D].

    mxu_bf16:   cast f32 matmul operands to bf16 (full MXU rate; f32 accumulate).
                Set False to preserve exact f32 matmul semantics.
    exp_in_bf16: compute exp in bf16 (v6e/v7x EUP micro-opt); off by default.
    """
    B, H, S, D = q.shape
    assert k.shape == (B, H, S, D) and v.shape == (B, H, S, D)
    scale = 1.0 / sqrt(float(n))

    tq = _pick_tile(S, tq)
    tkv = _pick_tile(S, tkv)
    # v7x megacore balance: only the parallel axes (B, H, qi) shard across the
    # two TensorCores -- don't let a huge tq collapse total parallel work below 2.
    while tq > 128 and B * H * (S // tq) < 2 and S % (tq // 2) == 0:
        tq //= 2

    mxu_dtype = jnp.bfloat16 if (mxu_bf16 and q.dtype == jnp.float32) else None

    kernel = functools.partial(_flash_sdpa_kernel, scale=scale, tkv=tkv,
                               mxu_dtype=mxu_dtype, exp_in_bf16=exp_in_bf16)

    grid = (B, H, S // tq)
    q_spec = pl.BlockSpec((None, None, tq, D), lambda b, h, qi: (b, h, qi, 0))
    # Full-S K/V blocks whose index_map ignores qi: fetched from HBM once per
    # (b, h) and reused (VMEM-resident) across all q-tiles of that head.
    kv_spec = pl.BlockSpec((None, None, S, D), lambda b, h, qi: (b, h, 0, 0))
    o_spec = pl.BlockSpec((None, None, tq, D), lambda b, h, qi: (b, h, qi, 0))

    # Rough VMEM footprint estimate: only request a higher scoped-VMEM limit
    # when we actually need it (never claim v7x's full 64 MiB).
    itemsize = jnp.dtype(q.dtype).itemsize
    est = (2 * 2 * S * D + 2 * 2 * tq * D) * itemsize   # K/V + Q/O, double-buffered
    est += 2 * tq * tkv * 4                             # f32 scores + exp intermediate
    est += tq * (D + 2) * 4                             # accumulator scratch
    cp_kwargs = dict(dimension_semantics=("parallel", "parallel", "parallel"))
    if est > (30 << 20):
        cp_kwargs["vmem_limit_bytes"] = min(int(est * 1.25), 48 << 20)
    # TODO(synk): for very long S where resident K/V no longer fits VMEM, fall
    # back to a tiled KV grid axis (previous design); also consider batching 2
    # heads per grid step when D == 64 to fill the MXU/lane axis better.

    return pl.pallas_call(
        kernel,
        out_shape=jax.ShapeDtypeStruct((B, H, S, D), q.dtype),
        grid_spec=pltpu.PrefetchScalarGridSpec(
            num_scalar_prefetch=0,
            grid=grid,
            in_specs=[q_spec, kv_spec, kv_spec],
            out_specs=o_spec,
            scratch_shapes=[
                pltpu.VMEM((tq, 1), jnp.float32),   # running row max  m
                pltpu.VMEM((tq, 1), jnp.float32),   # running denom    l
                pltpu.VMEM((tq, D), jnp.float32),   # running output  acc
            ],
        ),
        compiler_params=pltpu.CompilerParams(**cp_kwargs),
    )(q, k, v)


def _reference(q, k, v, n):
    qf = q.astype(jnp.float32)
    kf = k.astype(jnp.float32)
    vf = v.astype(jnp.float32)
    attn = jnp.einsum("bhqd,bhkd->bhqk", qf, kf) / sqrt(float(n))
    attn = jax.nn.softmax(attn, axis=-1)
    return jnp.einsum("bhqk,bhkd->bhqd", attn, vf)


if __name__ == "__main__":
    # Primary small deterministic check: batch=2, heads=4, seq=8, head_dim=32.
    B, H, S, D = 2, 4, 8, 32
    kq, kk, kv_ = jax.random.split(jax.random.PRNGKey(0), 3)
    q = jax.random.normal(kq, (B, H, S, D), dtype=jnp.float32)
    k = jax.random.normal(kk, (B, H, S, D), dtype=jnp.float32)
    v = jax.random.normal(kv_, (B, H, S, D), dtype=jnp.float32)
    n = D  # normalization constant, as passed to the module's forward
    ref = _reference(q, k, v, n)

    # Exact-f32 path (mxu_bf16=False): tight tolerance (exact reciprocal now).
    out_exact = jax.block_until_ready(
        scaled_dot_product_attention(q, k, v, n, mxu_bf16=False))
    assert out_exact.shape == (B, H, S, D)
    assert jnp.allclose(out_exact, ref, atol=1e-4, rtol=1e-4), \
        "exact f32 mismatch vs reference"

    # Default fast path (f32 inputs, bf16 MXU operands, f32 accumulation).
    out_fast = jax.block_until_ready(scaled_dot_product_attention(q, k, v, n))
    assert jnp.allclose(out_fast, ref, atol=2e-2, rtol=2e-2), \
        "bf16-MXU fast path mismatch vs reference"

    # Secondary check: bf16 inputs, sequence long enough to exercise multiple
    # q-tiles and multiple KV chunks of the resident K/V blocks.
    B2, H2, S2, D2 = 1, 2, 512, 64
    kq2, kk2, kv2 = jax.random.split(jax.random.PRNGKey(1), 3)
    q2 = jax.random.normal(kq2, (B2, H2, S2, D2), dtype=jnp.bfloat16)
    k2 = jax.random.normal(kk2, (B2, H2, S2, D2), dtype=jnp.bfloat16)
    v2 = jax.random.normal(kv2, (B2, H2, S2, D2), dtype=jnp.bfloat16)
    out2 = jax.block_until_ready(scaled_dot_product_attention(q2, k2, v2, D2))
    ref2 = _reference(q2, k2, v2, D2)
    assert jnp.allclose(out2.astype(jnp.float32), ref2, atol=2e-2, rtol=2e-2), \
        "bf16 tiled mismatch vs reference"

    print("KERNEL_OK")
</pallas_src>

<mosaic_0001>
module attributes {stable_mosaic.version = 11 : i64} {
  func.func @_flash_sdpa_kernel(%arg0: i32, %arg1: i32, %arg2: i32, %arg3: memref<1x1x8x32xf32, #tpu.memory_space<vmem>>, %arg4: memref<1x1x8x32xf32, #tpu.memory_space<vmem>>, %arg5: memref<1x1x8x32xf32, #tpu.memory_space<vmem>>, %arg6: memref<1x1x8x32xf32, #tpu.memory_space<vmem>>, %arg7: memref<8x1xf32, #tpu.memory_space<vmem>>, %arg8: memref<8x1xf32, #tpu.memory_space<vmem>>, %arg9: memref<8x32xf32, #tpu.memory_space<vmem>>) attributes {dimension_semantics = [#tpu.dimension_semantics<parallel>, #tpu.dimension_semantics<parallel>, #tpu.dimension_semantics<parallel>], iteration_bounds = array<i64: 2, 4, 1>, scalar_prefetch = 0 : i64, scratch_operands = 3 : i64, tpu.core_type = #tpu.core_type<tc>, window_params = [{transform_indices = @transform_0, window_bounds = array<i64: 1, 1, 8, 32>}, {transform_indices = @transform_1, window_bounds = array<i64: 1, 1, 8, 32>}, {transform_indices = @transform_2, window_bounds = array<i64: 1, 1, 8, 32>}, {transform_indices = @transform_3, window_bounds = array<i64: 1, 1, 8, 32>}]} {
    %cst = arith.constant 0xFF800000 : f32
    %0 = vector.broadcast %cst : f32 to vector<8x1xf32>
    %c0 = arith.constant 0 : index
    %c0_0 = arith.constant 0 : index
    %1 = vector.load %arg7[%c0, %c0_0] : memref<8x1xf32, #tpu.memory_space<vmem>>, vector<8x1xf32>
    tpu.vector_store %arg7[%c0, %c0_0], %0 {strides = array<i32>} : memref<8x1xf32, #tpu.memory_space<vmem>>, vector<8x1xf32>,
    %cst_1 = arith.constant 0.000000e+00 : f32
    %2 = vector.broadcast %cst_1 : f32 to vector<8x1xf32>
    %c0_2 = arith.constant 0 : index
    %c0_3 = arith.constant 0 : index
    %3 = vector.load %arg8[%c0_2, %c0_3] : memref<8x1xf32, #tpu.memory_space<vmem>>, vector<8x1xf32>
    tpu.vector_store %arg8[%c0_2, %c0_3], %2 {strides = array<i32>} : memref<8x1xf32, #tpu.memory_space<vmem>>, vector<8x1xf32>,
    %cst_4 = arith.constant 0.000000e+00 : f32
    %4 = vector.broadcast %cst_4 : f32 to vector<8x32xf32>
    %c0_5 = arith.constant 0 : index
    %c0_6 = arith.constant 0 : index
    %5 = vector.load %arg9[%c0_5, %c0_6] : memref<8x32xf32, #tpu.memory_space<vmem>>, vector<8x32xf32>
    tpu.vector_store %arg9[%c0_5, %c0_6], %4 {strides = array<i32>} : memref<8x32xf32, #tpu.memory_space<vmem>>, vector<8x32xf32>,
    %c0_7 = arith.constant 0 : index
    %c0_8 = arith.constant 0 : index
    %c0_9 = arith.constant 0 : index
    %c0_10 = arith.constant 0 : index
    %6 = vector.load %arg3[%c0_7, %c0_8, %c0_9, %c0_10] : memref<1x1x8x32xf32, #tpu.memory_space<vmem>>, vector<1x1x8x32xf32>
    %7 = vector.shape_cast %6 : vector<1x1x8x32xf32> to vector<8x32xf32>
    %c0_i32 = arith.constant 0 : i32
    %c1_i32 = arith.constant 1 : i32
    %8 = arith.muli %c0_i32, %c1_i32 : i32
    %c0_i32_11 = arith.constant 0 : i32
    %9 = arith.addi %c0_i32_11, %8 : i32
    %c8_i32 = arith.constant 8 : i32
    %10 = arith.muli %9, %c8_i32 : i32
    %11 = tpu.assume_multiple %10, 8 : i32
    %c0_12 = arith.constant 0 : index
    %c0_13 = arith.constant 0 : index
    %12 = arith.index_cast %11 : i32 to index
    %c0_14 = arith.constant 0 : index
    %13 = vector.load %arg4[%c0_12, %c0_13, %12, %c0_14] : memref<1x1x8x32xf32, #tpu.memory_space<vmem>>, vector<1x1x8x32xf32>
    %14 = vector.shape_cast %13 : vector<1x1x8x32xf32> to vector<8x32xf32>
    %c0_15 = arith.constant 0 : index
    %c0_16 = arith.constant 0 : index
    %15 = arith.index_cast %11 : i32 to index
    %c0_17 = arith.constant 0 : index
    %16 = vector.load %arg5[%c0_15, %c0_16, %15, %c0_17] : memref<1x1x8x32xf32, #tpu.memory_space<vmem>>, vector<1x1x8x32xf32>
    %17 = vector.shape_cast %16 : vector<1x1x8x32xf32> to vector<8x32xf32>
    %cst_18 = arith.constant dense<0.000000e+00> : vector<8x8xf32>
    %18 = tpu.matmul %7, %14, %cst_18 {dimension_numbers = #tpu.dot_dimension_numbers<[1], [1], [0], [0], [0, 0, 1, 0], [], []>} : vector<8x32xf32>, vector<8x32xf32>, vector<8x8xf32> -> vector<8x8xf32>
    %cst_19 = arith.constant 0.176776692 : f32
    %19 = vector.broadcast %cst_19 : f32 to vector<8x8xf32>
    %20 = arith.mulf %18, %19 : vector<8x8xf32>
    %c0_20 = arith.constant 0 : index
    %c0_21 = arith.constant 0 : index
    %21 = vector.load %arg7[%c0_20, %c0_21] : memref<8x1xf32, #tpu.memory_space<vmem>>, vector<8x1xf32>
    %cst_22 = arith.constant dense<0xFF800000> : vector<8xf32>
    %22 = vector.multi_reduction <maximumf>, %20, %cst_22 [1] : vector<8x8xf32> to vector<8xf32>
    %23 = vector.shape_cast %22 : vector<8xf32> to vector<8x1xf32>
    %24 = arith.maximumf %21, %23 : vector<8x1xf32>
    %25 = arith.subf %21, %24 : vector<8x1xf32>
    %26 = math.exp %25 : vector<8x1xf32>
    %27 = vector.broadcast %24 : vector<8x1xf32> to vector<8x8xf32>
    %28 = arith.subf %20, %27 : vector<8x8xf32>
    %29 = math.exp %28 : vector<8x8xf32>
    %cst_23 = arith.constant dense<0.000000e+00> : vector<8xf32>
    %30 = vector.multi_reduction <add>, %29, %cst_23 [1] : vector<8x8xf32> to vector<8xf32>
    %31 = vector.shape_cast %30 : vector<8xf32> to vector<8x1xf32>
    %c0_24 = arith.constant 0 : index
    %c0_25 = arith.constant 0 : index
    %32 = vector.load %arg8[%c0_24, %c0_25] : memref<8x1xf32, #tpu.memory_space<vmem>>, vector<8x1xf32>
    %33 = arith.mulf %26, %32 : vector<8x1xf32>
    %34 = arith.addf %33, %31 : vector<8x1xf32>
    %c0_26 = arith.constant 0 : index
    %c0_27 = arith.constant 0 : index
    %35 = vector.load %arg8[%c0_26, %c0_27] : memref<8x1xf32, #tpu.memory_space<vmem>>, vector<8x1xf32>
    tpu.vector_store %arg8[%c0_26, %c0_27], %34 {strides = array<i32>} : memref<8x1xf32, #tpu.memory_space<vmem>>, vector<8x1xf32>,
    %c0_28 = arith.constant 0 : index
    %c0_29 = arith.constant 0 : index
    %36 = vector.load %arg9[%c0_28, %c0_29] : memref<8x32xf32, #tpu.memory_space<vmem>>, vector<8x32xf32>
    %37 = vector.broadcast %26 : vector<8x1xf32> to vector<8x32xf32>
    %38 = arith.mulf %37, %36 : vector<8x32xf32>
    %cst_30 = arith.constant dense<0.000000e+00> : vector<8x32xf32>
    %39 = tpu.matmul %29, %17, %cst_30 {dimension_numbers = #tpu.dot_dimension_numbers<[1], [0], [0], [1], [0, 0, 1, 1], [], []>} : vector<8x8xf32>, vector<8x32xf32>, vector<8x32xf32> -> vector<8x32xf32>
    %40 = arith.addf %38, %39 : vector<8x32xf32>
    %c0_31 = arith.constant 0 : index
    %c0_32 = arith.constant 0 : index
    %41 = vector.load %arg9[%c0_31, %c0_32] : memref<8x32xf32, #tpu.memory_space<vmem>>, vector<8x32xf32>
    tpu.vector_store %arg9[%c0_31, %c0_32], %40 {strides = array<i32>} : memref<8x32xf32, #tpu.memory_space<vmem>>, vector<8x32xf32>,
    %c0_33 = arith.constant 0 : index
    %c0_34 = arith.constant 0 : index
    %42 = vector.load %arg7[%c0_33, %c0_34] : memref<8x1xf32, #tpu.memory_space<vmem>>, vector<8x1xf32>
    tpu.vector_store %arg7[%c0_33, %c0_34], %24 {strides = array<i32>} : memref<8x1xf32, #tpu.memory_space<vmem>>, vector<8x1xf32>,
    %c1_i32_35 = arith.constant 1 : i32
    %c0_36 = arith.constant 0 : index
    %c0_37 = arith.constant 0 : index
    %43 = vector.load %arg8[%c0_36, %c0_37] : memref<8x1xf32, #tpu.memory_space<vmem>>, vector<8x1xf32>
    %cst_38 = arith.constant 1.000000e+00 : f32
    %44 = vector.broadcast %cst_38 : f32 to vector<8x1xf32>
    %45 = arith.divf %44, %43 : vector<8x1xf32>
    %c0_39 = arith.constant 0 : index
    %c0_40 = arith.constant 0 : index
    %46 = vector.load %arg9[%c0_39, %c0_40] : memref<8x32xf32, #tpu.memory_space<vmem>>, vector<8x32xf32>
    %47 = vector.broadcast %45 : vector<8x1xf32> to vector<8x32xf32>
    %48 = arith.mulf %46, %47 : vector<8x32xf32>
    %c0_41 = arith.constant 0 : index
    %c0_42 = arith.constant 0 : index
    %c0_43 = arith.constant 0 : index
    %c0_44 = arith.constant 0 : index
    %49 = vector.load %arg6[%c0_41, %c0_42, %c0_43, %c0_44] : memref<1x1x8x32xf32, #tpu.memory_space<vmem>>, vector<1x1x8x32xf32>
    %50 = vector.shape_cast %49 : vector<1x1x8x32xf32> to vector<8x32xf32>
    %51 = vector.shape_cast %48 : vector<8x32xf32> to vector<1x1x8x32xf32>
    tpu.vector_store %arg6[%c0_41, %c0_42, %c0_43, %c0_44], %51 {strides = array<i32>} : memref<1x1x8x32xf32, #tpu.memory_space<vmem>>, vector<1x1x8x32xf32>,
    return
  }
  func.func @transform_0(%arg0: i32, %arg1: i32, %arg2: i32) -> (i32, i32, i32, i32) {
    %c0_i32 = arith.constant 0 : i32
    %c0_i32_0 = arith.constant 0 : i32
    return %arg0, %arg1, %arg2, %c0_i32 : i32, i32, i32, i32
  }
  func.func @transform_1(%arg0: i32, %arg1: i32, %arg2: i32) -> (i32, i32, i32, i32) {
    %c0_i32 = arith.constant 0 : i32
    %c0_i32_0 = arith.constant 0 : i32
    %c0_i32_1 = arith.constant 0 : i32
    return %arg0, %arg1, %c0_i32, %c0_i32_0 : i32, i32, i32, i32
  }
  func.func @transform_2(%arg0: i32, %arg1: i32, %arg2: i32) -> (i32, i32, i32, i32) {
    %c0_i32 = arith.constant 0 : i32
    %c0_i32_0 = arith.constant 0 : i32
    %c0_i32_1 = arith.constant 0 : i32
    return %arg0, %arg1, %c0_i32, %c0_i32_0 : i32, i32, i32, i32
  }
  func.func @transform_3(%arg0: i32, %arg1: i32, %arg2: i32) -> (i32, i32, i32, i32) {
    %c0_i32 = arith.constant 0 : i32
    %c0_i32_0 = arith.constant 0 : i32
    return %arg0, %arg1, %arg2, %c0_i32 : i32, i32, i32, i32
  }
}

</mosaic_0001>

<llo_original>
// kernel: tpu_custom_call.1
$region0: #{tpu_custom_call.1}
  #allocation0 [shape = 'u32[]', space=smem, size = 0x4, offset = 0x4, fixed_abs, tag = 'smem constant byte address 0x4 - core index']
  #allocation1 [shape = 'u32[144,128]{1,0:T(1,128)}', space=vmem, size = 0x12000, scoped, tag = 'internal scratch']
  #allocation2 [shape = 'f32[8,1]{1,0:T(8,128)}', space=vmem, size = 0x1000, scoped, tag = 'scratch operand']
  #allocation3 [shape = 'f32[8,1]{1,0:T(8,128)}', space=vmem, size = 0x1000, scoped, tag = 'scratch operand']
  #allocation4 [shape = 'f32[8,32]{1,0:T(8,128)}', space=vmem, size = 0x1000, scoped, tag = 'scratch operand']
  %s0 = inlined_call_operand.hbm [shape: f32[2,4,8,32], index: 0, kind: input, shape index: {}]
  %s1 = inlined_call_operand.hbm [shape: f32[2,4,8,32], index: 1, kind: input, shape index: {}]
  %s2 = inlined_call_operand.hbm [shape: f32[2,4,8,32], index: 2, kind: input, shape index: {}]
  %s3 = inlined_call_operand.hbm [shape: f32[2,4,8,32], index: 3, kind: output, shape index: {}]
  %s4 = sld [smem:[#allocation0]]
  $region57: #{tpu_custom_call.1} parent=0
    _
  %s6 = ssub.s32 1, %s4
  %s7 = scalar_select 0, %s6, %s4
  $region1: #{tpu_custom_call.1} parent=0
    #allocation5 [shape = 'u8[8192]{0}', space=vmem, size = 0x2000, scoped, tag = 'input window, operand 0']
    #allocation6 [shape = 's32[2]{0}', space=sflag, size = 0x8, scoped, tag = 'scoped memory for tpu_custom_call.1']
    #allocation7 [shape = 's32[2]{0}', space=sflag, size = 0x8, scoped, tag = 'scoped memory for tpu_custom_call.1']
    #allocation8 [shape = 'u8[8192]{0}', space=vmem, size = 0x2000, scoped, tag = 'input window, operand 1']
    #allocation9 [shape = 's32[2]{0}', space=sflag, size = 0x8, scoped, tag = 'scoped memory for tpu_custom_call.1']
    #allocation10 [shape = 'u8[8192]{0}', space=vmem, size = 0x2000, scoped, tag = 'input window, operand 2']
    #allocation11 [shape = 'u8[8192]{0}', space=vmem, size = 0x2000, scoped, tag = 'output window, operand 0']
    %8 = vsyncpa [#allocation6], 0
    %s9 = scalar_lea.sflag [#allocation6], 1
    %10 = vsyncpa %s9, 0
    %11 = vsyncpa [#allocation9], 0
    %s12 = scalar_lea.sflag [#allocation9], 1
    %13 = vsyncpa %s12, 0
    %14 = vsyncpa [#allocation7], 0
    %s15 = scalar_lea.sflag [#allocation7], 1
    %16 = vsyncpa %s15, 0
    loop: start=0, step=1, limit=10
    $region2: #{tpu_custom_call.1} parent=1 // loop_pre_header
      _
    $region3: #{tpu_custom_call.1} parent=1 // loop_header
      %s18 = sphi 0, %s22
      %p19 = scmp.ge.s32.totalorder %s18, 10
      %s25 = sphi 0, %s44
      %s26 = sphi 0, %s40
      %s27 = sphi 0, %s36
      %s28 = sphi 0, %s25
      %s29 = sphi 0, %s26
      %s30 = sphi 0, %s27
      %s31 = sphi 0, %s28
      %s32 = sphi 0, %s29
      %s33 = sphi 0, %s30
      %s51 = sphi 0, %s53
      %s54 = sphi 0, %s51
      %s55 = sphi 0, %s54
      %s71 = sphi 0, %s55
      %s79 = sphi 0, %s81
      %s82 = sphi 0, %s79
      %s83 = sphi 0, %s82
      %s99 = sphi 0, %s83
      %s107 = sphi 0, %s109
      %s110 = sphi 0, %s107
      %s111 = sphi 0, %s110
      %s127 = sphi 0, %s111
      %s137 = sphi 0, %s139
      %s140 = sphi 0, %s137
      %s141 = sphi 0, %s140
      %s157 = sphi 0, %s141
    $region4: #{tpu_custom_call.1} parent=1 // loop_header_branch
      %21 = sbr.rel (%p19) target = $region8
    $region5: #{tpu_custom_call.1} parent=1 // loop_body
      %s23 = ssub.s32 %s18, 1
      %s24 = ssub.s32 %s18, 2
      %s34 = sadd.s32 1, %s27
      %p35 = scmp.ge.s32.totalorder %s34, 1
      %s36 = scalar_select %p35, 0, %s34
      %s37 = sadd.s32 1, %s26
      %s38 = scalar_select %p35, %s37, %s26
      %p39 = scmp.ge.s32.totalorder %s38, 4
      %s40 = scalar_select %p39, 0, %s38
      %s41 = sadd.s32 1, %s25
      %s42 = scalar_select %p39, %s41, %s25
      %p43 = scmp.ge.s32.totalorder %s42, 2
      %s44 = scalar_select %p43, 0, %s42
      %s45 = ssub.s32 %s25, %s44
      %s46 = ssub.s32 %s26, %s40
      %s47 = sor.u32 %s45, %s46
      %s48 = ssub.s32 %s27, %s36
      %s49 = sor.u32 %s47, %s48
      %p50 = scmp.eq.s32.totalorder %s49, 0
      %s52 = sadd.s32 %s51, 1
      %s53 = scalar_select %p50, %s51, %s52
      %p56 = pneg %p50
      %p57 = scmp.eq.s32.totalorder %s18, 7
      %p58 = por %p56, %p57
      %p59 = scmp.ne.s32.totalorder %s51, %s54
      %p60 = scmp.eq.s32.totalorder %s18, 0
      %p61 = por %p59, %p60
      %p62 = scmp.ne.s32.totalorder %s51, %s54
      %p63 = scmp.eq.s32.totalorder %s23, 7
      %p64 = por %p62, %p63
      %p65 = scmp.ne.s32.totalorder %s54, %s55
      %p66 = scmp.eq.s32.totalorder %s23, 0
      %p67 = por %p65, %p66
      %p68 = scmp.ne.s32.totalorder %s54, %s55
      %p69 = scmp.eq.s32.totalorder %s24, 7
      %p70 = por %p68, %p69
      %p72 = scmp.ne.s32.totalorder %s55, %s71
      %p73 = scmp.eq.s32.totalorder %s24, 0
      %p74 = por %p72, %p73
      %s75 = ssub.s32 %s25, %s44
      %s76 = ssub.s32 %s26, %s40
      %s77 = sor.u32 %s75, %s76
      %p78 = scmp.eq.s32.totalorder %s77, 0
      %s80 = sadd.s32 %s79, 1
      %s81 = scalar_select %p78, %s79, %s80
      %p84 = pneg %p78
      %p85 = scmp.eq.s32.totalorder %s18, 7
      %p86 = por %p84, %p85
      %p87 = scmp.ne.s32.totalorder %s79, %s82
      %p88 = scmp.eq.s32.totalorder %s18, 0
      %p89 = por %p87, %p88
      %p90 = scmp.ne.s32.totalorder %s79, %s82
      %p91 = scmp.eq.s32.totalorder %s23, 7
      %p92 = por %p90, %p91
      %p93 = scmp.ne.s32.totalorder %s82, %s83
      %p94 = scmp.eq.s32.totalorder %s23, 0
      %p95 = por %p93, %p94
      %p96 = scmp.ne.s32.totalorder %s82, %s83
      %p97 = scmp.eq.s32.totalorder %s24, 7
      %p98 = por %p96, %p97
      %p100 = scmp.ne.s32.totalorder %s83, %s99
      %p101 = scmp.eq.s32.totalorder %s24, 0
      %p102 = por %p100, %p101
      %s103 = ssub.s32 %s25, %s44
      %s104 = ssub.s32 %s26, %s40
      %s105 = sor.u32 %s103, %s104
      %p106 = scmp.eq.s32.totalorder %s105, 0
      %s108 = sadd.s32 %s107, 1
      %s109 = scalar_select %p106, %s107, %s108
      %p112 = pneg %p106
      %p113 = scmp.eq.s32.totalorder %s18, 7
      %p114 = por %p112, %p113
      %p115 = scmp.ne.s32.totalorder %s107, %s110
      %p116 = scmp.eq.s32.totalorder %s18, 0
      %p117 = por %p115, %p116
      %p118 = scmp.ne.s32.totalorder %s107, %s110
      %p119 = scmp.eq.s32.totalorder %s23, 7
      %p120 = por %p118, %p119
      %p121 = scmp.ne.s32.totalorder %s110, %s111
      %p122 = scmp.eq.s32.totalorder %s23, 0
      %p123 = por %p121, %p122
      %p124 = scmp.ne.s32.totalorder %s110, %s111
      %p125 = scmp.eq.s32.totalorder %s24, 7
      %p126 = por %p124, %p125
      %p128 = scmp.ne.s32.totalorder %s111, %s127
      %p129 = scmp.eq.s32.totalorder %s24, 0
      %p130 = por %p128, %p129
      %s131 = ssub.s32 %s25, %s44
      %s132 = ssub.s32 %s26, %s40
      %s133 = sor.u32 %s131, %s132
      %s134 = ssub.s32 %s27, %s36
      %s135 = sor.u32 %s133, %s134
      %p136 = scmp.eq.s32.totalorder %s135, 0
      %s138 = sadd.s32 %s137, 1
      %s139 = scalar_select %p136, %s137, %s138
      %p142 = pneg %p136
      %p143 = scmp.eq.s32.totalorder %s18, 7
      %p144 = por %p142, %p143
      %p145 = scmp.ne.s32.totalorder %s137, %s140
      %p146 = scmp.eq.s32.totalorder %s18, 0
      %p147 = por %p145, %p146
      %p148 = scmp.ne.s32.totalorder %s137, %s140
      %p149 = scmp.eq.s32.totalorder %s23, 7
      %p150 = por %p148, %p149
      %p151 = scmp.ne.s32.totalorder %s140, %s141
      %p152 = scmp.eq.s32.totalorder %s23, 0
      %p153 = por %p151, %p152
      %p154 = scmp.ne.s32.totalorder %s140, %s141
      %p155 = scmp.eq.s32.totalorder %s24, 7
      %p156 = por %p154, %p155
      %p158 = scmp.ne.s32.totalorder %s141, %s157
      %p159 = scmp.eq.s32.totalorder %s24, 0
      %p160 = por %p158, %p159
      %p161 = scmp.le.s32.totalorder 1, %s18
      %p162 = scmp.lt.s32.totalorder %s18, 9
      %p163 = pnand %p161, %p162
      %p164 = pneg %p163
      // Predicated region
      $region9: #{tpu_custom_call.1} parent=5 // pred_check
        _
      $region10: #{tpu_custom_call.1} parent=5 // pred_check_branch
        %166 = sbr.rel (%p163) target = $region12
      $region11: #{tpu_custom_call.1} parent=5 // pred_region
        %s167 = ssub.s32 %s18, 1
      $region12: #{tpu_custom_call.1} parent=5 // pred_fallthru
        _
      %p168 = scmp.lt.s32.totalorder %s18, 8
      // Predicated region
      $region13: #{tpu_custom_call.1} parent=5 // pred_check
        %p169 = pneg %p168
      $region14: #{tpu_custom_call.1} parent=5 // pred_check_branch
        %171 = sbr.rel (%p169) target = $region16
      $region15: #{tpu_custom_call.1} parent=5 // pred_region
        // Predicated region
        $region17: #{tpu_custom_call.1} parent=15 // pred_check
          %p172 = pneg %p61
        $region18: #{tpu_custom_call.1} parent=15 // pred_check_branch
          %174 = sbr.rel (%p172) target = $region20
        $region19: #{tpu_custom_call.1} parent=15 // pred_region
          %s175 = sand.u32 %s51, 1
          %s176 = scalar_lea.sflag [#allocation6], %s175
          %s177 = sand.u32 %s51, 1
          %s178 = smul.addr %s177, 8
          %s179 = scalar_lea.vmem [#allocation5], %s178
          %s181 = ssub.s32 128, 128
          %182 = vsyncadd %s176, %s181
          %s183 = sadd.s32 %s27, %s26
          %s184 = smul.addr %s25, 4
          %s185 = sadd.s32 %s183, %s184
          %s186 = smul.addr %s185, 128
          %s187 = scalar_lea.hbm %s0, %s186
          %s189 = sshll.u32 %s179, 4
          %s190 = int_to_ptr.vmem [resolvable:$true] %s189
          %192 = dma.hbm_to_vmem [thread:$0]  %s187, 128, %s190, %s176
        $region20: #{tpu_custom_call.1} parent=15 // pred_fallthru
          _
        // Predicated region
        $region21: #{tpu_custom_call.1} parent=15 // pred_check
          %p193 = pneg %p89
        $region22: #{tpu_custom_call.1} parent=15 // pred_check_branch
          %195 = sbr.rel (%p193) target = $region24
        $region23: #{tpu_custom_call.1} parent=15 // pred_region
          %s196 = sand.u32 %s18, 1
          %s197 = scalar_lea.sflag [#allocation9], %s196
          %s198 = sand.u32 %s79, 1
          %s199 = smul.addr %s198, 8
          %s200 = scalar_lea.vmem [#allocation8], %s199
          %s202 = ssub.s32 128, 128
          %203 = vsyncadd %s197, %s202
          %s204 = smul.addr %s25, 4
          %s205 = sadd.s32 %s26, %s204
          %s206 = smul.addr %s205, 128
          %s207 = scalar_lea.hbm %s1, %s206
          %s209 = sshll.u32 %s200, 4
          %s210 = int_to_ptr.vmem [resolvable:$true] %s209
          %212 = dma.hbm_to_vmem [thread:$0]  %s207, 128, %s210, %s197
        $region24: #{tpu_custom_call.1} parent=15 // pred_fallthru
          _
        // Predicated region
        $region25: #{tpu_custom_call.1} parent=15 // pred_check
          %p213 = pneg %p117
        $region26: #{tpu_custom_call.1} parent=15 // pred_check_branch
          %215 = sbr.rel (%p213) target = $region28
        $region27: #{tpu_custom_call.1} parent=15 // pred_region
          %s216 = sand.u32 %s18, 1
          %s217 = scalar_lea.sflag [#allocation9], %s216
          %s218 = sand.u32 %s107, 1
          %s219 = smul.addr %s218, 8
          %s220 = scalar_lea.vmem [#allocation10], %s219
          %s222 = ssub.s32 128, 128
          %223 = vsyncadd %s217, %s222
          %s224 = smul.addr %s25, 4
          %s225 = sadd.s32 %s26, %s224
          %s226 = smul.addr %s225, 128
          %s227 = scalar_lea.hbm %s2, %s226
          %s229 = sshll.u32 %s220, 4
          %s230 = int_to_ptr.vmem [resolvable:$true] %s229
          %232 = dma.hbm_to_vmem [thread:$0]  %s227, 128, %s230, %s217
        $region28: #{tpu_custom_call.1} parent=15 // pred_fallthru
          _
      $region16: #{tpu_custom_call.1} parent=5 // pred_fallthru
        _
      %p233 = scmp.le.s32.totalorder 1, %s18
      %p234 = scmp.lt.s32.totalorder %s18, 9
      %p235 = pnand %p233, %p234
      %p236 = pneg %p235
      // Predicated region
      $region29: #{tpu_custom_call.1} parent=5 // pred_check
        _
      $region30: #{tpu_custom_call.1} parent=5 // pred_check_branch
        %238 = sbr.rel (%p235) target = $region32
      $region31: #{tpu_custom_call.1} parent=5 // pred_region
        %s239 = ssub.s32 %s18, 1
        %s240 = sand.u32 %s54, 1
        %s241 = scalar_lea.sflag [#allocation6], %s240
        %s242 = sand.u32 %s54, 1
        %s243 = smul.addr %s242, 8
        %s244 = scalar_lea.vmem [#allocation5], %s243
        // Predicated region
        $region33: #{tpu_custom_call.1} parent=31 // pred_check
          %p245 = pneg %p67
        $region34: #{tpu_custom_call.1} parent=31 // pred_check_branch
          %247 = sbr.rel (%p245) target = $region36
        $region35: #{tpu_custom_call.1} parent=31 // pred_region
          %248 = dma.done %s241, 128
        $region36: #{tpu_custom_call.1} parent=31 // pred_fallthru
          _
        %s249 = sand.u32 %s23, 1
        %s250 = scalar_lea.sflag [#allocation9], %s249
        %s251 = sand.u32 %s82, 1
        %s252 = smul.addr %s251, 8
        %s253 = scalar_lea.vmem [#allocation8], %s252
        // Predicated region
        $region37: #{tpu_custom_call.1} parent=31 // pred_check
          %p254 = pneg %p95
        $region38: #{tpu_custom_call.1} parent=31 // pred_check_branch
          %256 = sbr.rel (%p254) target = $region40
        $region39: #{tpu_custom_call.1} parent=31 // pred_region
          %257 = dma.done %s250, 128
        $region40: #{tpu_custom_call.1} parent=31 // pred_fallthru
          _
        %s258 = sand.u32 %s23, 1
        %s259 = scalar_lea.sflag [#allocation9], %s258
        %s260 = sand.u32 %s110, 1
        %s261 = smul.addr %s260, 8
        %s262 = scalar_lea.vmem [#allocation10], %s261
        // Predicated region
        $region41: #{tpu_custom_call.1} parent=31 // pred_check
          %p263 = pneg %p123
        $region42: #{tpu_custom_call.1} parent=31 // pred_check_branch
          %265 = sbr.rel (%p263) target = $region44
        $region43: #{tpu_custom_call.1} parent=31 // pred_region
          %266 = dma.done %s259, 128
        $region44: #{tpu_custom_call.1} parent=31 // pred_fallthru
          _
        %s267 = sand.u32 %s54, 1
        %s268 = scalar_lea.sflag [#allocation6], %s267
        %s269 = sand.u32 %s54, 1
        %s270 = smul.addr %s269, 8
        %s271 = scalar_lea.vmem [#allocation5], %s270
        %p272 = pneg %p67
        %p273 = pneg %p64
        %s274 = sand.u32 %s23, 1
        %s275 = scalar_lea.sflag [#allocation9], %s274
        %s276 = sand.u32 %s82, 1
        %s277 = smul.addr %s276, 8
        %s278 = scalar_lea.vmem [#allocation8], %s277
        %p279 = pneg %p95
        %p280 = pneg %p92
        %s281 = sand.u32 %s23, 1
        %s282 = scalar_lea.sflag [#allocation9], %s281
        %s283 = sand.u32 %s110, 1
        %s284 = smul.addr %s283, 8
        %s285 = scalar_lea.vmem [#allocation10], %s284
        %p286 = pneg %p123
        %p287 = pneg %p120
        %p288 = pneg %p153
        %p289 = pneg %p150
        %s290 = sand.u32 %s140, 1
        %s291 = scalar_lea.sflag [#allocation7], %s290
        %s292 = sand.u32 %s140, 1
        %s293 = smul.addr %s292, 8
        %s294 = scalar_lea.vmem [#allocation11], %s293
        %vm295 = vcmask 7168
        %296 = vst.msk [vmem:[#allocation2] sm:$0xff] %vm295, -inf
        %297 = vst.msk [vmem:[#allocation3] sm:$0xff] %vm295, 0.0
        %vm298 = vcmask 261120
        %299 = vst.msk [vmem:[#allocation4] sm:$0xff] %vm298, 0.0
        %v300 = vld [vmem:[%s244] sm:$0xff]
        %v301 = vld [vmem:[%s253] sm:$0xff]
        %v302 = vld [vmem:[%s262] sm:$0xff]
        %v304 = vsel %vm298, %v300, 0
        %v307 = vsel %vm298, %v301, 0
        %309 = vmatprep.subr.mxu0 0.0
        %310 = vmatpush1.xpose.msra.mxu0 %v307
        %311 = vmatprep.subr.mxu0 0.0
        %312 = vmatpush1.xpose.msra.mxu0 0.0
        %313 = vmatprep.subr.mxu0 0.0
        %314 = vmatpush1.xpose.msra.mxu0 0.0
        %315 = vmatprep.subr.mxu0 0.0
        %316 = vmatpush1.xpose.msra.mxu0 0.0
        %317 = vmatprep.subr.mxu0 0.0
        %318 = vmatpush1.xpose.msra.mxu0 0.0
        %319 = vmatprep.subr.mxu0 0.0
        %320 = vmatpush1.xpose.msra.mxu0 0.0
        %321 = vmatprep.subr.mxu0 0.0
        %322 = vmatpush1.xpose.msra.mxu0 0.0
        %323 = vmatprep.subr.mxu0 0.0
        %324 = vmatpush1.xpose.msra.mxu0 0.0
        %325 = vmatprep.subr.mxu0 0.0
        %326 = vmatpush1.xpose.msra.mxu0 0.0
        %327 = vmatprep.subr.mxu0 0.0
        %328 = vmatpush1.xpose.msra.mxu0 0.0
        %329 = vmatprep.subr.mxu0 0.0
        %330 = vmatpush1.xpose.msra.mxu0 0.0
        %331 = vmatprep.subr.mxu0 0.0
        %332 = vmatpush1.xpose.msra.mxu0 0.0
        %333 = vmatprep.subr.mxu0 0.0
        %334 = vmatpush1.xpose.msra.mxu0 0.0
        %335 = vmatprep.subr.mxu0 0.0
        %336 = vmatpush1.xpose.msra.mxu0 0.0
        %337 = vmatprep.subr.mxu0 0.0
        %338 = vmatpush1.xpose.msra.mxu0 0.0
        %339 = vmatprep.subr.mxu0 0.0
        %340 = vmatpush1.xpose.msra.mxu0 0.0
        %341 = vmatprep.subr.mxu0 0.0
        %342 = vmatpush1.xpose.msra.mxu0 0.0
        %343 = vmatprep.subr.mxu0 0.0
        %344 = vmatpush1.xpose.msra.mxu0 0.0
        %345 = vmatprep.subr.mxu0 0.0
        %346 = vmatpush1.xpose.msra.mxu0 0.0
        %347 = vmatprep.subr.mxu0 0.0
        %348 = vmatpush1.xpose.msra.mxu0 0.0
        %349 = vmatprep.subr.mxu0 0.0
        %350 = vmatpush1.xpose.msra.mxu0 0.0
        %351 = vmatprep.subr.mxu0 0.0
        %352 = vmatpush1.xpose.msra.mxu0 0.0
        %353 = vmatprep.subr.mxu0 0.0
        %354 = vmatpush1.xpose.msra.mxu0 0.0
        %355 = vmatprep.subr.mxu0 0.0
        %356 = vmatpush1.xpose.msra.mxu0 0.0
        %357 = vmatprep.subr.mxu0 0.0
        %358 = vmatpush1.xpose.msra.mxu0 0.0
        %359 = vmatprep.subr.mxu0 0.0
        %360 = vmatpush1.xpose.msra.mxu0 0.0
        %361 = vmatprep.subr.mxu0 0.0
        %362 = vmatpush1.xpose.msra.mxu0 0.0
        %363 = vmatprep.subr.mxu0 0.0
        %364 = vmatpush1.xpose.msra.mxu0 0.0
        %365 = vmatprep.subr.mxu0 0.0
        %366 = vmatpush1.xpose.msra.mxu0 0.0
        %367 = vmatprep.subr.mxu0 0.0
        %368 = vmatpush1.xpose.msra.mxu0 0.0
        %369 = vmatprep.subr.mxu0 0.0
        %370 = vmatpush1.xpose.msra.mxu0 0.0
        %371 = vmatprep.subr.mxu0 0.0
        %372 = vmatpush1.xpose.msra.mxu0 0.0
        %373 = vmatprep.mubr.f32.mxu0 0.0
        %374 = vmatmul.mubr.f32.gmra.mrb[0].mxu0 %v304
        %v375 = vpop.f32.mrb[0].mxu0
        %v376 = vadd.f32 0.0, %v375
        %v377 = vpop.f32.mrb[0].mxu0
        %378 = vdwg.mxu0
        %v379 = vmul.f32 %v376, 0.17677669
        %v380 = vld [vmem:[#allocation2] sm:$0xff]
        %vm381 = vcmask 64512
        %v382 = vsel %vm381, %v379, -inf
        %383 = vmax.xlane.f32.xlu0 %v382
        %v384 = vpop.xlane.xlu0 %383
        %v385 = vmax.f32 %v380, %v384
        %v386 = vsub.f32 %v380, %v385
        %v387 = vmul.f32 %v386, 1.442695
        %v388 = vpow.pop %v387
        %390 = vset.pattern.permute.xlu0 0
        %391 = vperm.xlu0 %390, %v385
        %v392 = vpop.permute.xlu0 %391
        %v394 = vsub.f32 %v379, %v392
        %v395 = vmul.f32 %v394, 1.442695
        %v396 = vpow.pop %v395
        %v397 = vsel %vm381, %v396, 0.0
        %398 = vadd.xlane.f32.xlu0 %v397
        %v399 = vpop.xlane.xlu0 %398
        %v400 = vld [vmem:[#allocation3] sm:$0xff]
        %v401 = vmul.f32 %v388, %v400
        %v402 = vadd.f32 %v401, %v399
        %403 = vst.msk [vmem:[#allocation3] sm:$0xff] %vm295, %v402
        %v404 = vld [vmem:[#allocation4] sm:$0xff]
        %406 = vset.pattern.permute.xlu0 0
        %407 = vperm.xlu0 %406, %v388
        %v408 = vpop.permute.xlu0 %407
        %v410 = vmul.f32 %v408, %v404
        %v412 = vsel %vm381, %v396, 0
        %414 = vmatprep.subr.mxu0 0.0
        %415 = vmatpush1.msra.mxu0 %v302
        %416 = vmatprep.subr.mxu0 0.0
        %417 = vmatpush1.msra.mxu0 0.0
        %418 = vmatprep.subr.mxu0 0.0
        %419 = vmatpush1.msra.mxu0 0.0
        %420 = vmatprep.subr.mxu0 0.0
        %421 = vmatpush1.msra.mxu0 0.0
        %422 = vmatprep.subr.mxu0 0.0
        %423 = vmatpush1.msra.mxu0 0.0
        %424 = vmatprep.subr.mxu0 0.0
        %425 = vmatpush1.msra.mxu0 0.0
        %426 = vmatprep.subr.mxu0 0.0
        %427 = vmatpush1.msra.mxu0 0.0
        %428 = vmatprep.subr.mxu0 0.0
        %429 = vmatpush1.msra.mxu0 0.0
        %430 = vmatprep.subr.mxu0 0.0
        %431 = vmatpush1.msra.mxu0 0.0
        %432 = vmatprep.subr.mxu0 0.0
        %433 = vmatpush1.msra.mxu0 0.0
        %434 = vmatprep.subr.mxu0 0.0
        %435 = vmatpush1.msra.mxu0 0.0
        %436 = vmatprep.subr.mxu0 0.0
        %437 = vmatpush1.msra.mxu0 0.0
        %438 = vmatprep.subr.mxu0 0.0
        %439 = vmatpush1.msra.mxu0 0.0
        %440 = vmatprep.subr.mxu0 0.0
        %441 = vmatpush1.msra.mxu0 0.0
        %442 = vmatprep.subr.mxu0 0.0
        %443 = vmatpush1.msra.mxu0 0.0
        %444 = vmatprep.subr.mxu0 0.0
        %445 = vmatpush1.msra.mxu0 0.0
        %446 = vmatprep.subr.mxu0 0.0
        %447 = vmatpush1.msra.mxu0 0.0
        %448 = vmatprep.subr.mxu0 0.0
        %449 = vmatpush1.msra.mxu0 0.0
        %450 = vmatprep.subr.mxu0 0.0
        %451 = vmatpush1.msra.mxu0 0.0
        %452 = vmatprep.subr.mxu0 0.0
        %453 = vmatpush1.msra.mxu0 0.0
        %454 = vmatprep.subr.mxu0 0.0
        %455 = vmatpush1.msra.mxu0 0.0
        %456 = vmatprep.subr.mxu0 0.0
        %457 = vmatpush1.msra.mxu0 0.0
        %458 = vmatprep.subr.mxu0 0.0
        %459 = vmatpush1.msra.mxu0 0.0
        %460 = vmatprep.subr.mxu0 0.0
        %461 = vmatpush1.msra.mxu0 0.0
        %462 = vmatprep.subr.mxu0 0.0
        %463 = vmatpush1.msra.mxu0 0.0
        %464 = vmatprep.subr.mxu0 0.0
        %465 = vmatpush1.msra.mxu0 0.0
        %466 = vmatprep.subr.mxu0 0.0
        %467 = vmatpush1.msra.mxu0 0.0
        %468 = vmatprep.subr.mxu0 0.0
        %469 = vmatpush1.msra.mxu0 0.0
        %470 = vmatprep.subr.mxu0 0.0
        %471 = vmatpush1.msra.mxu0 0.0
        %472 = vmatprep.subr.mxu0 0.0
        %473 = vmatpush1.msra.mxu0 0.0
        %474 = vmatprep.subr.mxu0 0.0
        %475 = vmatpush1.msra.mxu0 0.0
        %476 = vmatprep.subr.mxu0 0.0
        %477 = vmatpush1.msra.mxu0 0.0
        %478 = vmatprep.mubr.f32.mxu0 0.0
        %479 = vmatmul.mubr.f32.gmra.mrb[0].mxu0 %v412
        %v480 = vpop.f32.mrb[0].mxu0
        %v481 = vadd.f32 0.0, %v480
        %v482 = vpop.f32.mrb[0].mxu0
        %483 = vdwg.mxu0
        %v484 = vadd.f32 %v410, %v481
        %485 = vst.msk [vmem:[#allocation4] sm:$0xff] %vm298, %v484
        %486 = vst.msk [vmem:[#allocation2] sm:$0xff] %vm295, %v385
        %v487 = vld [vmem:[#allocation3] sm:$0xff]
        %v488 = vrcp.pop %v487
        %v489 = vmul.f32 1.0, %v488
        %v490 = vld [vmem:[#allocation4] sm:$0xff]
        %492 = vset.pattern.permute.xlu0 0
        %493 = vperm.xlu0 %492, %v489
        %v494 = vpop.permute.xlu0 %493
        %v496 = vmul.f32 %v490, %v494
        %497 = vst.msk [vmem:[%s294] sm:$0xff] %vm298, %v496
        %s498 = sand.u32 %s140, 1
        %s499 = scalar_lea.sflag [#allocation7], %s498
        %s500 = sand.u32 %s140, 1
        %s501 = smul.addr %s500, 8
        %s502 = scalar_lea.vmem [#allocation11], %s501
        // Predicated region
        $region45: #{tpu_custom_call.1} parent=31 // pred_check
          %p503 = pneg %p150
        $region46: #{tpu_custom_call.1} parent=31 // pred_check_branch
          %505 = sbr.rel (%p503) target = $region48
        $region47: #{tpu_custom_call.1} parent=31 // pred_region
          %s507 = ssub.s32 128, 128
          %508 = vsyncadd %s499, %s507
          %s509 = sadd.s32 %s30, %s29
          %s510 = smul.addr %s28, 4
          %s511 = sadd.s32 %s509, %s510
          %s512 = smul.addr %s511, 128
          %s513 = scalar_lea.hbm %s3, %s512
          %s515 = sshll.u32 %s502, 4
          %s516 = int_to_ptr.vmem [resolvable:$true] %s515
          %518 = dma.vmem_to_hbm [thread:$0]  %s516, 128, %s513, %s499
        $region48: #{tpu_custom_call.1} parent=31 // pred_fallthru
          _
      $region32: #{tpu_custom_call.1} parent=5 // pred_fallthru
        _
      %p519 = scmp.le.s32.totalorder 2, %s18
      // Predicated region
      $region49: #{tpu_custom_call.1} parent=5 // pred_check
        %p520 = pneg %p519
      $region50: #{tpu_custom_call.1} parent=5 // pred_check_branch
        %522 = sbr.rel (%p520) target = $region52
      $region51: #{tpu_custom_call.1} parent=5 // pred_region
        %s523 = ssub.s32 %s18, 2
        // Predicated region
        $region53: #{tpu_custom_call.1} parent=51 // pred_check
          %p524 = pneg %p156
        $region54: #{tpu_custom_call.1} parent=51 // pred_check_branch
          %526 = sbr.rel (%p524) target = $region56
        $region55: #{tpu_custom_call.1} parent=51 // pred_region
          %s527 = sand.u32 %s141, 1
          %s528 = scalar_lea.sflag [#allocation7], %s527
          %s529 = sand.u32 %s141, 1
          %s530 = smul.addr %s529, 8
          %s531 = scalar_lea.vmem [#allocation11], %s530
          %532 = dma.done %s528, 128
        $region56: #{tpu_custom_call.1} parent=51 // pred_fallthru
          _
      $region52: #{tpu_custom_call.1} parent=5 // pred_fallthru
        _
    $region6: #{tpu_custom_call.1} parent=1 // loop_footer
      %s22 = sadd.s32 1, %s18
    $region7: #{tpu_custom_call.1} parent=1 // loop_footer_branch
      %17 = sbr.rel target = $region3
    $region8: #{tpu_custom_call.1} parent=1 // loop_exit
      _
    %533 = vsyncpa [#allocation6], 1
    %s534 = scalar_lea.sflag [#allocation6], 1
    %535 = vsyncpa %s534, 1
    %536 = vsyncpa [#allocation9], 1
    %s537 = scalar_lea.sflag [#allocation9], 1
    %538 = vsyncpa %s537, 1
    %539 = vsyncpa [#allocation7], 1
    %s540 = scalar_lea.sflag [#allocation7], 1
    %541 = vsyncpa %s540, 1

</llo_original>
